<compile_context>
chip_gen: v7x
topology: tpu7x:2x2x1
jax: 0.10.0
libtpu: 0.0.40
codegen_flags: <defaults>
</compile_context>

<pallas_src>
import functools

import jax
import jax.numpy as jnp
from jax import lax
from jax.experimental import pallas as pl
from jax.experimental.pallas import tpu as pltpu


# --------------------------------------------------------------------------
# shared tiny conv + sigmoid helper (runs on (nb, C, 1) f32 stats)
# --------------------------------------------------------------------------
def _conv_sigmoid_scale(w, mean, center, n_ch):
    """Conv2d(1,1,(5,2),padding=(2,0),bias=False) over t=(mean, center), then 1+sigmoid.

    w: list of 10 SMEM scalars (row-major (5,2) weight); mean/center: (nb, C, 1) f32.
    Returns the per-channel scale (1 + y) as (nb, C, 1) f32.
    """
    nb = mean.shape[0]
    zpad = jnp.zeros((nb, 2, 1), jnp.float32)
    mean_p = jnp.concatenate([zpad, mean, zpad], axis=1)       # (nb, C+4, 1)
    cent_p = jnp.concatenate([zpad, center, zpad], axis=1)     # (nb, C+4, 1)
    spp = jnp.zeros((nb, n_ch, 1), jnp.float32)
    for k in range(5):                                         # unrolled at trace time
        spp = spp + w[2 * k] * mean_p[:, k:k + n_ch] \
                  + w[2 * k + 1] * cent_p[:, k:k + n_ch]
    return 1.0 + jax.nn.sigmoid(spp)


# --------------------------------------------------------------------------
# single-pass kernel: whole (nb, C, H*W) slab per grid step
# --------------------------------------------------------------------------
def spm_cam_kernel(w_ref, x_ref, o_ref, *, center_idx, n_ch, inv_hw):
    # mean with the f32 cast fused into the reduction -> no long-lived f32 copy
    mean = jnp.sum(x_ref[...], axis=-1, dtype=jnp.float32, keepdims=True) * inv_hw
    center = x_ref[:, :, center_idx:center_idx + 1].astype(jnp.float32)
    w = [w_ref[i] for i in range(10)]                          # hoisted SMEM reads
    scale = _conv_sigmoid_scale(w, mean, center, n_ch)         # (nb, C, 1) f32
    # re-read x in its native dtype and apply the per-channel scale
    o_ref[...] = x_ref[...] * scale.astype(o_ref.dtype)


# --------------------------------------------------------------------------
# two-pass HW-tiled kernels (single image slab does not fit VMEM)
# --------------------------------------------------------------------------
def _spm_cam_scale_kernel(w_ref, x_ref, y_ref, sum_ref, cen_ref, *,
                          center_tile, center_off, n_ch, inv_hw, hw_tile, total_hw):
    h = pl.program_id(1)

    @pl.when(h == 0)
    def _init():
        sum_ref[...] = jnp.zeros_like(sum_ref)
        cen_ref[...] = jnp.zeros_like(cen_ref)

    if total_hw % hw_tile:          # trace-time: mask the ragged last HW tile
        lane = lax.broadcasted_iota(jnp.int32, x_ref.shape, 2)
        valid = (h * hw_tile + lane) < total_hw
        xblk = jnp.where(valid, x_ref[...], 0)
    else:
        xblk = x_ref[...]
    sum_ref[...] += jnp.sum(xblk, axis=-1, dtype=jnp.float32, keepdims=True)

    @pl.when(h == center_tile)
    def _center():
        cen_ref[...] = x_ref[:, :, center_off:center_off + 1].astype(jnp.float32)

    @pl.when(h == pl.num_programs(1) - 1)
    def _finalize():
        w = [w_ref[i] for i in range(10)]
        mean = sum_ref[...] * inv_hw
        y_ref[...] = _conv_sigmoid_scale(w, mean, cen_ref[...], n_ch)


def _spm_cam_apply_kernel(s_ref, x_ref, o_ref):
    o_ref[...] = x_ref[...] * s_ref[...].astype(o_ref.dtype)


# --------------------------------------------------------------------------
# tiling heuristics
# --------------------------------------------------------------------------
def _safe_vmem_limit():
    """Never request more than 3/4 of this generation's physical VMEM.

    v7x has only 64 MiB per TensorCore (-> ~48 MiB ceiling); v5e/v6e have
    128 MiB.  If the query fails we assume the smallest (v7x) part.
    """
    cap = 64 << 20
    try:
        info = pltpu.get_tpu_info()
        cap = int(getattr(info, "vmem_capacity_bytes", cap) or cap)
    except Exception:
        pass
    return (3 * cap) // 4


def _pick_batch_tile(n, img_bytes, budget, target_block=4 << 20,
                     min_block=1 << 20, min_steps=8):
    """How many batch images to fold per grid step.

    Targets ~4 MiB blocks (>=86%% of HBM roofline measured), keeps the
    double-buffered in+out footprint (4x block) under `budget`, and prefers
    >= min_steps grid steps (>=4 per v7x TensorCore) as long as blocks stay
    >= ~1 MiB so the DMA pipeline has a steady state.  Always >=2 steps when
    n >= 2 so the "parallel" axis can shard across cores.
    """
    nb = max(1, min(n, target_block // img_bytes, budget // (4 * img_bytes)))
    nb_steps = max(1, n // min_steps)
    if nb_steps * img_bytes >= min_block:
        nb = min(nb, nb_steps)
    if n >= 2:
        nb = min(nb, pl.cdiv(n, 2))
    return int(nb)


def _pick_hw_tile(c, hw, itemsize, budget, target_block=4 << 20):
    per_col = max(1, c * itemsize)              # bytes per HW column of a (1,C,t) block
    tile = min(target_block // per_col, budget // (4 * per_col))
    tile = max((tile // 128) * 128, 128)
    if hw >= 128:
        tile = min(tile, (hw // 128) * 128)
    else:
        tile = hw                               # tiny spatial: single full tile
    return int(tile)


# --------------------------------------------------------------------------
# wrappers
# --------------------------------------------------------------------------
def _spm_cam_two_pass(x3, w_flat, *, center_idx, safe_limit, hw_tile=None):
    N, C, HW = x3.shape
    itemsize = jnp.dtype(x3.dtype).itemsize
    budget = max(safe_limit - (4 << 20), 8 << 20)
    if hw_tile is None:
        hw_tile = _pick_hw_tile(C, HW, itemsize, budget)
    hw_tile = max(1, min(int(hw_tile), HW))
    n_hw = pl.cdiv(HW, hw_tile)
    center_tile, center_off = divmod(center_idx, hw_tile)

    cparams = dict(dimension_semantics=("parallel", "arbitrary"))
    need = 4 * C * hw_tile * itemsize + (2 << 20)
    if need > (14 << 20):                       # exceeds v5e's 16 MiB scoped default
        cparams["vmem_limit_bytes"] = int(min(safe_limit, need))

    scale_kernel = functools.partial(
        _spm_cam_scale_kernel, center_tile=int(center_tile),
        center_off=int(center_off), n_ch=C, inv_hw=1.0 / HW,
        hw_tile=hw_tile, total_hw=HW)

    # pass 1: per-channel scale (1 + sigmoid(conv(mean, center)))
    scale = pl.pallas_call(
        scale_kernel,
        out_shape=jax.ShapeDtypeStruct((N, C, 1), jnp.float32),
        grid=(N, n_hw),
        in_specs=[
            pl.BlockSpec(memory_space=pltpu.MemorySpace.SMEM),          # conv weight
            pl.BlockSpec((1, C, hw_tile), lambda b, h: (b, 0, h)),      # x tile
        ],
        out_specs=pl.BlockSpec((1, C, 1), lambda b, h: (b, 0, 0)),
        scratch_shapes=[pltpu.VMEM((1, C, 1), jnp.float32),             # running sum
                        pltpu.VMEM((1, C, 1), jnp.float32)],            # centre pixel
        compiler_params=pltpu.CompilerParams(**cparams),
    )(w_flat, x3)

    # pass 2: re-read x tile by tile and apply the scale
    out = pl.pallas_call(
        _spm_cam_apply_kernel,
        out_shape=jax.ShapeDtypeStruct((N, C, HW), x3.dtype),
        grid=(N, n_hw),
        in_specs=[
            pl.BlockSpec((1, C, 1), lambda b, h: (b, 0, 0)),
            pl.BlockSpec((1, C, hw_tile), lambda b, h: (b, 0, h)),
        ],
        out_specs=pl.BlockSpec((1, C, hw_tile), lambda b, h: (b, 0, h)),
        compiler_params=pltpu.CompilerParams(**cparams),
    )(scale, x3)
    return out


def spm_cam(x, conv_w, *, force_two_pass=False, hw_tile=None):
    """x: (N, C, H, W) in its native dtype (f32 / bf16); conv_w: (5, 2)."""
    N, C, H, W = x.shape
    HW = H * W
    center_idx = int((H * W - 1) / 2)               # matches the module's int()
    x3 = x.reshape(N, C, HW)                        # no dtype widening at HBM
    itemsize = jnp.dtype(x.dtype).itemsize
    w_flat = conv_w.astype(jnp.float32).reshape(-1)  # (10,): avoids 2D SMEM padding

    safe_limit = _safe_vmem_limit()
    budget = max(safe_limit - (4 << 20), 8 << 20)
    img_bytes = C * HW * itemsize

    if force_two_pass or 4 * img_bytes > budget:
        out = _spm_cam_two_pass(x3, w_flat, center_idx=center_idx,
                                safe_limit=safe_limit, hw_tile=hw_tile)
        return out.reshape(N, C, H, W)

    nb = _pick_batch_tile(N, img_bytes, budget)
    cparams = dict(dimension_semantics=("parallel",))
    need = 4 * nb * img_bytes + (2 << 20)
    if need > (14 << 20):                           # exceeds v5e's 16 MiB scoped default
        cparams["vmem_limit_bytes"] = int(min(safe_limit, need))

    kernel = functools.partial(spm_cam_kernel, center_idx=center_idx,
                               n_ch=C, inv_hw=1.0 / HW)
    out = pl.pallas_call(
        kernel,
        out_shape=jax.ShapeDtypeStruct((N, C, HW), x.dtype),
        grid=(pl.cdiv(N, nb),),
        in_specs=[
            pl.BlockSpec(memory_space=pltpu.MemorySpace.SMEM),          # conv weight
            pl.BlockSpec((nb, C, HW), lambda n: (n, 0, 0)),             # x block
        ],
        out_specs=pl.BlockSpec((nb, C, HW), lambda n: (n, 0, 0)),
        compiler_params=pltpu.CompilerParams(**cparams),
    )(w_flat, x3)
    return out.reshape(N, C, H, W)


def spm_cam_reference(x, conv_w):
    """Pure-JAX reference mirroring the PyTorch forward (computed in f32)."""
    N, C, H, W = x.shape
    xf = x.reshape(N, C, -1).astype(jnp.float32)
    center = xf[:, :, int((H * W - 1) / 2)]                     # (N, C)
    mean = xf.mean(axis=2)                                      # (N, C)
    mp = jnp.pad(mean, ((0, 0), (2, 2)))
    cp = jnp.pad(center, ((0, 0), (2, 2)))
    spp = jnp.zeros((N, C), jnp.float32)
    for k in range(5):
        spp = spp + conv_w[k, 0] * mp[:, k:k + C] \
                  + conv_w[k, 1] * cp[:, k:k + C]
    y = jax.nn.sigmoid(spp)[:, :, None, None]                   # (N, C, 1, 1)
    return x.astype(jnp.float32) * (1.0 + y)


if __name__ == "__main__":
    key = jax.random.PRNGKey(0)
    kx, kw, kx2, kx3 = jax.random.split(key, 4)

    # PyTorch Conv2d(1,1,(5,2),bias=False) weight, squeezed to (5, 2)
    fan_in = 1 * 5 * 2
    bound = 1.0 / (fan_in ** 0.5)
    conv_w = jax.random.uniform(kw, (5, 2), jnp.float32, -bound, bound)

    # ---- single-pass path: f32 and bf16 (native-dtype HBM I/O) ------------
    N, C, H, W = 4, 16, 16, 16
    x32 = jax.random.normal(kx, (N, C, H, W), dtype=jnp.float32)
    out32 = jax.block_until_ready(spm_cam(x32, conv_w))
    ref32 = spm_cam_reference(x32, conv_w)
    assert out32.shape == (N, C, H, W) and out32.dtype == x32.dtype
    assert jnp.allclose(out32, ref32, atol=1e-5, rtol=1e-5), "f32 mismatch"

    xbf = x32.astype(jnp.bfloat16)
    outbf = jax.block_until_ready(spm_cam(xbf, conv_w))
    refbf = spm_cam_reference(xbf.astype(jnp.float32), conv_w)
    assert outbf.dtype == jnp.bfloat16
    assert jnp.allclose(outbf.astype(jnp.float32), refbf,
                        atol=5e-2, rtol=2e-2), "bf16 mismatch"

    # ---- partial trailing batch block (N not a multiple of nb) ------------
    x3 = jax.random.normal(kx3, (3, 16, 16, 16), dtype=jnp.float32)
    out3 = jax.block_until_ready(spm_cam(x3, conv_w))
    ref3 = spm_cam_reference(x3, conv_w)
    assert jnp.allclose(out3, ref3, atol=1e-5, rtol=1e-5), "partial-batch mismatch"

    # ---- two-pass HW-tiled path (forced; odd spatial -> ragged HW tiles) --
    x4 = jax.random.normal(kx2, (2, 8, 13, 13), dtype=jnp.float32)
    out4 = jax.block_until_ready(
        spm_cam(x4, conv_w, force_two_pass=True, hw_tile=128))
    ref4 = spm_cam_reference(x4, conv_w)
    assert jnp.allclose(out4, ref4, atol=1e-5, rtol=1e-5), "two-pass f32 mismatch"

    x4bf = x4.astype(jnp.bfloat16)
    out4bf = jax.block_until_ready(
        spm_cam(x4bf, conv_w, force_two_pass=True, hw_tile=128))
    ref4bf = spm_cam_reference(x4bf.astype(jnp.float32), conv_w)
    assert jnp.allclose(out4bf.astype(jnp.float32), ref4bf,
                        atol=5e-2, rtol=2e-2), "two-pass bf16 mismatch"

    print("KERNEL_OK")
</pallas_src>

<mosaic_0001>
module attributes {stable_mosaic.version = 11 : i64} {
  func.func @spm_cam_kernel(%arg0: i32, %arg1: memref<10xf32, #tpu.memory_space<smem>>, %arg2: memref<2x16x256xf32, #tpu.memory_space<vmem>>, %arg3: memref<2x16x256xf32, #tpu.memory_space<vmem>>) attributes {dimension_semantics = [#tpu.dimension_semantics<parallel>], iteration_bounds = array<i64: 2>, scalar_prefetch = 0 : i64, scratch_operands = 0 : i64, tpu.core_type = #tpu.core_type<tc>, window_params = [{transform_indices = @transform_0, window_bounds = array<i64: 10>}, {transform_indices = @transform_1, window_bounds = array<i64: 2, 16, 256>}, {transform_indices = @transform_2, window_bounds = array<i64: 2, 16, 256>}]} {
    %c0 = arith.constant 0 : index
    %c0_0 = arith.constant 0 : index
    %c0_1 = arith.constant 0 : index
    %0 = vector.load %arg2[%c0, %c0_0, %c0_1] : memref<2x16x256xf32, #tpu.memory_space<vmem>>, vector<2x16x256xf32>
    %cst = arith.constant dense<0.000000e+00> : vector<2x16xf32>
    %1 = vector.multi_reduction <add>, %0, %cst [2] : vector<2x16x256xf32> to vector<2x16xf32>
    %2 = vector.shape_cast %1 : vector<2x16xf32> to vector<2x16x1xf32>
    %cst_2 = arith.constant 3.906250e-03 : f32
    %3 = vector.broadcast %cst_2 : f32 to vector<2x16x1xf32>
    %4 = arith.mulf %2, %3 : vector<2x16x1xf32>
    %c0_3 = arith.constant 0 : index
    %c0_4 = arith.constant 0 : index
    %c127 = arith.constant 127 : index
    %5 = vector.load %arg2[%c0_3, %c0_4, %c127] : memref<2x16x256xf32, #tpu.memory_space<vmem>>, vector<2x16x1xf32>
    %c0_5 = arith.constant 0 : index
    %6 = memref.load %arg1[%c0_5] : memref<10xf32, #tpu.memory_space<smem>>
    %c1 = arith.constant 1 : index
    %7 = memref.load %arg1[%c1] : memref<10xf32, #tpu.memory_space<smem>>
    %c2 = arith.constant 2 : index
    %8 = memref.load %arg1[%c2] : memref<10xf32, #tpu.memory_space<smem>>
    %c3 = arith.constant 3 : index
    %9 = memref.load %arg1[%c3] : memref<10xf32, #tpu.memory_space<smem>>
    %c4 = arith.constant 4 : index
    %10 = memref.load %arg1[%c4] : memref<10xf32, #tpu.memory_space<smem>>
    %c5 = arith.constant 5 : index
    %11 = memref.load %arg1[%c5] : memref<10xf32, #tpu.memory_space<smem>>
    %c6 = arith.constant 6 : index
    %12 = memref.load %arg1[%c6] : memref<10xf32, #tpu.memory_space<smem>>
    %c7 = arith.constant 7 : index
    %13 = memref.load %arg1[%c7] : memref<10xf32, #tpu.memory_space<smem>>
    %c8 = arith.constant 8 : index
    %14 = memref.load %arg1[%c8] : memref<10xf32, #tpu.memory_space<smem>>
    %c9 = arith.constant 9 : index
    %15 = memref.load %arg1[%c9] : memref<10xf32, #tpu.memory_space<smem>>
    %cst_6 = arith.constant 0.000000e+00 : f32
    %16 = vector.broadcast %cst_6 : f32 to vector<2x2x1xf32>
    %17 = tpu.concatenate %16, %4, %16 in 1 : vector<2x2x1xf32>, vector<2x16x1xf32>, vector<2x2x1xf32> -> vector<2x20x1xf32>
    %18 = tpu.concatenate %16, %5, %16 in 1 : vector<2x2x1xf32>, vector<2x16x1xf32>, vector<2x2x1xf32> -> vector<2x20x1xf32>
    %cst_7 = arith.constant 0.000000e+00 : f32
    %19 = vector.broadcast %cst_7 : f32 to vector<2x16x1xf32>
    %20 = vector.extract_strided_slice %17 {offsets = [0, 0, 0], sizes = [2, 16, 1], strides = [1, 1, 1]} : vector<2x20x1xf32> to vector<2x16x1xf32>
    %21 = vector.broadcast %6 : f32 to vector<2x16x1xf32>
    %22 = arith.mulf %21, %20 : vector<2x16x1xf32>
    %23 = arith.addf %19, %22 : vector<2x16x1xf32>
    %24 = vector.extract_strided_slice %18 {offsets = [0, 0, 0], sizes = [2, 16, 1], strides = [1, 1, 1]} : vector<2x20x1xf32> to vector<2x16x1xf32>
    %25 = vector.broadcast %7 : f32 to vector<2x16x1xf32>
    %26 = arith.mulf %25, %24 : vector<2x16x1xf32>
    %27 = arith.addf %23, %26 : vector<2x16x1xf32>
    %28 = vector.extract_strided_slice %17 {offsets = [0, 1, 0], sizes = [2, 16, 1], strides = [1, 1, 1]} : vector<2x20x1xf32> to vector<2x16x1xf32>
    %29 = vector.broadcast %8 : f32 to vector<2x16x1xf32>
    %30 = arith.mulf %29, %28 : vector<2x16x1xf32>
    %31 = arith.addf %27, %30 : vector<2x16x1xf32>
    %32 = vector.extract_strided_slice %18 {offsets = [0, 1, 0], sizes = [2, 16, 1], strides = [1, 1, 1]} : vector<2x20x1xf32> to vector<2x16x1xf32>
    %33 = vector.broadcast %9 : f32 to vector<2x16x1xf32>
    %34 = arith.mulf %33, %32 : vector<2x16x1xf32>
    %35 = arith.addf %31, %34 : vector<2x16x1xf32>
    %36 = vector.extract_strided_slice %17 {offsets = [0, 2, 0], sizes = [2, 16, 1], strides = [1, 1, 1]} : vector<2x20x1xf32> to vector<2x16x1xf32>
    %37 = vector.broadcast %10 : f32 to vector<2x16x1xf32>
    %38 = arith.mulf %37, %36 : vector<2x16x1xf32>
    %39 = arith.addf %35, %38 : vector<2x16x1xf32>
    %40 = vector.extract_strided_slice %18 {offsets = [0, 2, 0], sizes = [2, 16, 1], strides = [1, 1, 1]} : vector<2x20x1xf32> to vector<2x16x1xf32>
    %41 = vector.broadcast %11 : f32 to vector<2x16x1xf32>
    %42 = arith.mulf %41, %40 : vector<2x16x1xf32>
    %43 = arith.addf %39, %42 : vector<2x16x1xf32>
    %44 = vector.extract_strided_slice %17 {offsets = [0, 3, 0], sizes = [2, 16, 1], strides = [1, 1, 1]} : vector<2x20x1xf32> to vector<2x16x1xf32>
    %45 = vector.broadcast %12 : f32 to vector<2x16x1xf32>
    %46 = arith.mulf %45, %44 : vector<2x16x1xf32>
    %47 = arith.addf %43, %46 : vector<2x16x1xf32>
    %48 = vector.extract_strided_slice %18 {offsets = [0, 3, 0], sizes = [2, 16, 1], strides = [1, 1, 1]} : vector<2x20x1xf32> to vector<2x16x1xf32>
    %49 = vector.broadcast %13 : f32 to vector<2x16x1xf32>
    %50 = arith.mulf %49, %48 : vector<2x16x1xf32>
    %51 = arith.addf %47, %50 : vector<2x16x1xf32>
    %52 = vector.extract_strided_slice %17 {offsets = [0, 4, 0], sizes = [2, 16, 1], strides = [1, 1, 1]} : vector<2x20x1xf32> to vector<2x16x1xf32>
    %53 = vector.broadcast %14 : f32 to vector<2x16x1xf32>
    %54 = arith.mulf %53, %52 : vector<2x16x1xf32>
    %55 = arith.addf %51, %54 : vector<2x16x1xf32>
    %56 = vector.extract_strided_slice %18 {offsets = [0, 4, 0], sizes = [2, 16, 1], strides = [1, 1, 1]} : vector<2x20x1xf32> to vector<2x16x1xf32>
    %57 = vector.broadcast %15 : f32 to vector<2x16x1xf32>
    %58 = arith.mulf %57, %56 : vector<2x16x1xf32>
    %59 = arith.addf %55, %58 : vector<2x16x1xf32>
    %60 = arith.negf %59 : vector<2x16x1xf32>
    %61 = math.exp %60 : vector<2x16x1xf32>
    %cst_8 = arith.constant 1.000000e+00 : f32
    %62 = vector.broadcast %cst_8 : f32 to vector<2x16x1xf32>
    %63 = arith.addf %62, %61 : vector<2x16x1xf32>
    %64 = arith.divf %62, %63 : vector<2x16x1xf32>
    %cst_9 = arith.constant 1.000000e+00 : f32
    %65 = vector.broadcast %cst_9 : f32 to vector<2x16x1xf32>
    %66 = arith.addf %65, %64 : vector<2x16x1xf32>
    %c0_10 = arith.constant 0 : index
    %c0_11 = arith.constant 0 : index
    %c0_12 = arith.constant 0 : index
    %67 = vector.load %arg2[%c0_10, %c0_11, %c0_12] : memref<2x16x256xf32, #tpu.memory_space<vmem>>, vector<2x16x256xf32>
    %68 = vector.broadcast %66 : vector<2x16x1xf32> to vector<2x16x256xf32>
    %69 = arith.mulf %67, %68 : vector<2x16x256xf32>
    %c0_13 = arith.constant 0 : index
    %c0_14 = arith.constant 0 : index
    %c0_15 = arith.constant 0 : index
    %70 = vector.load %arg3[%c0_13, %c0_14, %c0_15] : memref<2x16x256xf32, #tpu.memory_space<vmem>>, vector<2x16x256xf32>
    tpu.vector_store %arg3[%c0_13, %c0_14, %c0_15], %69 {strides = array<i32>} : memref<2x16x256xf32, #tpu.memory_space<vmem>>, vector<2x16x256xf32>,
    return
  }
  func.func @transform_0(%arg0: i32) -> i32 {
    %c0_i32 = arith.constant 0 : i32
    %c0_i32_0 = arith.constant 0 : i32
    return %c0_i32 : i32
  }
  func.func @transform_1(%arg0: i32) -> (i32, i32, i32) {
    %c0_i32 = arith.constant 0 : i32
    %c0_i32_0 = arith.constant 0 : i32
    %c0_i32_1 = arith.constant 0 : i32
    return %arg0, %c0_i32, %c0_i32_0 : i32, i32, i32
  }
  func.func @transform_2(%arg0: i32) -> (i32, i32, i32) {
    %c0_i32 = arith.constant 0 : i32
    %c0_i32_0 = arith.constant 0 : i32
    %c0_i32_1 = arith.constant 0 : i32
    return %arg0, %c0_i32, %c0_i32_0 : i32, i32, i32
  }
}

</mosaic_0001>

<llo_original>
// kernel: tpu_custom_call.1
$region0: #{tpu_custom_call.1}
  #allocation0 [shape = 'u32[]', space=smem, size = 0x4, offset = 0x4, fixed_abs, tag = 'smem constant byte address 0x4 - core index']
  #allocation1 [shape = 'u32[144,128]{1,0:T(1,128)}', space=vmem, size = 0x12000, scoped, tag = 'internal scratch']
  %s0 = inlined_call_operand.hbm [shape: f32[10], index: 0, kind: input, shape index: {}]
  %s1 = inlined_call_operand.hbm [shape: f32[4,16,256], index: 1, kind: input, shape index: {}]
  %s2 = inlined_call_operand.hbm [shape: f32[4,16,256], index: 2, kind: output, shape index: {}]
  %s3 = sld [smem:[#allocation0]]
  $region49: #{tpu_custom_call.1} parent=0
    _
  %s5 = ssub.s32 1, %s3
  %s6 = scalar_select 0, %s5, %s3
  $region1: #{tpu_custom_call.1} parent=0
    #allocation2 [shape = 'u8[512]{0}', space=smem, size = 0x200, scoped, tag = 'input window, operand 0, single buffered']
    #allocation3 [shape = 's32[2]{0}', space=sflag, size = 0x8, scoped, tag = 'scoped memory for tpu_custom_call.1']
    #allocation4 [shape = 's32[2]{0}', space=sflag, size = 0x8, scoped, tag = 'scoped memory for tpu_custom_call.1']
    #allocation5 [shape = 's32[2]{0}', space=sflag, size = 0x8, scoped, tag = 'scoped memory for tpu_custom_call.1']
    #allocation6 [shape = 'u8[65536]{0}', space=vmem, size = 0x10000, scoped, tag = 'input window, operand 1']
    #allocation7 [shape = 'u8[65536]{0}', space=vmem, size = 0x10000, scoped, tag = 'output window, operand 0']
    %7 = vsyncpa [#allocation5], 0
    %8 = vsyncpa [#allocation3], 0
    %s9 = scalar_lea.sflag [#allocation3], 1
    %10 = vsyncpa %s9, 0
    %11 = vsyncpa [#allocation4], 0
    %s12 = scalar_lea.sflag [#allocation4], 1
    %13 = vsyncpa %s12, 0
    loop: start=0, step=1, limit=4
    $region2: #{tpu_custom_call.1} parent=1 // loop_pre_header
      _
    $region3: #{tpu_custom_call.1} parent=1 // loop_header
      %s15 = sphi 0, %s19
      %p16 = scmp.ge.s32.totalorder %s15, 4
      %s23 = sphi 0, %s23
      %s25 = sphi 0, %s23
      %s26 = sphi 0, %s25
      %s40 = sphi 0, %s26
      %s46 = sphi 0, %s48
      %s49 = sphi 0, %s46
      %s50 = sphi 0, %s49
      %s66 = sphi 0, %s50
      %s72 = sphi 0, %s74
      %s75 = sphi 0, %s72
      %s76 = sphi 0, %s75
      %s92 = sphi 0, %s76
    $region4: #{tpu_custom_call.1} parent=1 // loop_header_branch
      %18 = sbr.rel (%p16) target = $region8
    $region5: #{tpu_custom_call.1} parent=1 // loop_body
      %s20 = ssub.s32 %s15, 1
      %s21 = ssub.s32 %s15, 2
      %s22 = sadd.s32 %s15, 1
      %s24 = sadd.s32 %s23, 1
      %p27 = scmp.eq.s32.totalorder %s15, 1
      %p28 = scmp.ne.s32.totalorder %s23, %s25
      %p29 = scmp.eq.s32.totalorder %s15, 0
      %p30 = por %p28, %p29
      %p31 = scmp.ne.s32.totalorder %s23, %s25
      %p32 = scmp.eq.s32.totalorder %s20, 1
      %p33 = por %p31, %p32
      %p34 = scmp.ne.s32.totalorder %s25, %s26
      %p35 = scmp.eq.s32.totalorder %s20, 0
      %p36 = por %p34, %p35
      %p37 = scmp.ne.s32.totalorder %s25, %s26
      %p38 = scmp.eq.s32.totalorder %s21, 1
      %p39 = por %p37, %p38
      %p41 = scmp.ne.s32.totalorder %s26, %s40
      %p42 = scmp.eq.s32.totalorder %s21, 0
      %p43 = por %p41, %p42
      %s44 = ssub.s32 %s15, %s22
      %p45 = scmp.eq.s32.totalorder %s44, 0
      %s47 = sadd.s32 %s46, 1
      %s48 = scalar_select %p45, %s46, %s47
      %p51 = pneg %p45
      %p52 = scmp.eq.s32.totalorder %s15, 1
      %p53 = por %p51, %p52
      %p54 = scmp.ne.s32.totalorder %s46, %s49
      %p55 = scmp.eq.s32.totalorder %s15, 0
      %p56 = por %p54, %p55
      %p57 = scmp.ne.s32.totalorder %s46, %s49
      %p58 = scmp.eq.s32.totalorder %s20, 1
      %p59 = por %p57, %p58
      %p60 = scmp.ne.s32.totalorder %s49, %s50
      %p61 = scmp.eq.s32.totalorder %s20, 0
      %p62 = por %p60, %p61
      %p63 = scmp.ne.s32.totalorder %s49, %s50
      %p64 = scmp.eq.s32.totalorder %s21, 1
      %p65 = por %p63, %p64
      %p67 = scmp.ne.s32.totalorder %s50, %s66
      %p68 = scmp.eq.s32.totalorder %s21, 0
      %p69 = por %p67, %p68
      %s70 = ssub.s32 %s15, %s22
      %p71 = scmp.eq.s32.totalorder %s70, 0
      %s73 = sadd.s32 %s72, 1
      %s74 = scalar_select %p71, %s72, %s73
      %p77 = pneg %p71
      %p78 = scmp.eq.s32.totalorder %s15, 1
      %p79 = por %p77, %p78
      %p80 = scmp.ne.s32.totalorder %s72, %s75
      %p81 = scmp.eq.s32.totalorder %s15, 0
      %p82 = por %p80, %p81
      %p83 = scmp.ne.s32.totalorder %s72, %s75
      %p84 = scmp.eq.s32.totalorder %s20, 1
      %p85 = por %p83, %p84
      %p86 = scmp.ne.s32.totalorder %s75, %s76
      %p87 = scmp.eq.s32.totalorder %s20, 0
      %p88 = por %p86, %p87
      %p89 = scmp.ne.s32.totalorder %s75, %s76
      %p90 = scmp.eq.s32.totalorder %s21, 1
      %p91 = por %p89, %p90
      %p93 = scmp.ne.s32.totalorder %s76, %s92
      %p94 = scmp.eq.s32.totalorder %s21, 0
      %p95 = por %p93, %p94
      %p96 = scmp.le.s32.totalorder 1, %s15
      %p97 = scmp.lt.s32.totalorder %s15, 3
      %p98 = pnand %p96, %p97
      %p99 = pneg %p98
      // Predicated region
      $region9: #{tpu_custom_call.1} parent=5 // pred_check
        _
      $region10: #{tpu_custom_call.1} parent=5 // pred_check_branch
        %101 = sbr.rel (%p98) target = $region12
      $region11: #{tpu_custom_call.1} parent=5 // pred_region
        %s102 = ssub.s32 %s15, 1
        // Predicated region
        $region13: #{tpu_custom_call.1} parent=11 // pred_check
          %p103 = pneg %p36
        $region14: #{tpu_custom_call.1} parent=11 // pred_check_branch
          %105 = sbr.rel (%p103) target = $region16
        $region15: #{tpu_custom_call.1} parent=11 // pred_region
          %s107 = ssub.s32 16, 16
          %108 = vsyncadd [#allocation5], %s107
          %111 = dma.hbm_to_smem %s0, 16, [#allocation2], [#allocation5]
        $region16: #{tpu_custom_call.1} parent=11 // pred_fallthru
          _
      $region12: #{tpu_custom_call.1} parent=5 // pred_fallthru
        _
      %p112 = scmp.lt.s32.totalorder %s15, 2
      // Predicated region
      $region17: #{tpu_custom_call.1} parent=5 // pred_check
        %p113 = pneg %p112
      $region18: #{tpu_custom_call.1} parent=5 // pred_check_branch
        %115 = sbr.rel (%p113) target = $region20
      $region19: #{tpu_custom_call.1} parent=5 // pred_region
        // Predicated region
        $region21: #{tpu_custom_call.1} parent=19 // pred_check
          %p116 = pneg %p56
        $region22: #{tpu_custom_call.1} parent=19 // pred_check_branch
          %118 = sbr.rel (%p116) target = $region24
        $region23: #{tpu_custom_call.1} parent=19 // pred_region
          %s119 = sand.u32 %s46, 1
          %s120 = scalar_lea.sflag [#allocation3], %s119
          %s121 = sand.u32 %s46, 1
          %s122 = smul.addr %s121, 64
          %s123 = scalar_lea.vmem [#allocation6], %s122
          %s124 = smul.u32 2, %s15
          %s126 = ssub.s32 1024, 1024
          %127 = vsyncadd %s120, %s126
          %s128 = smul.addr %s124, 4
          %s129 = smul.addr %s128, 128
          %s130 = scalar_lea.hbm %s1, %s129
          %s131 = sshll.u32 %s123, 4
          %s132 = int_to_ptr.vmem [resolvable:$true] %s131
          %137 = dma.hbm_to_vmem [thread:$0]  %s130, 1024, %s132, %s120, 256, 256, 16
        $region24: #{tpu_custom_call.1} parent=19 // pred_fallthru
          _
      $region20: #{tpu_custom_call.1} parent=5 // pred_fallthru
        _
      %p138 = scmp.le.s32.totalorder 1, %s15
      %p139 = scmp.lt.s32.totalorder %s15, 3
      %p140 = pnand %p138, %p139
      %p141 = pneg %p140
      // Predicated region
      $region25: #{tpu_custom_call.1} parent=5 // pred_check
        _
      $region26: #{tpu_custom_call.1} parent=5 // pred_check_branch
        %143 = sbr.rel (%p140) target = $region28
      $region27: #{tpu_custom_call.1} parent=5 // pred_region
        %s144 = ssub.s32 %s15, 1
        // Predicated region
        $region29: #{tpu_custom_call.1} parent=27 // pred_check
          %p145 = pneg %p36
        $region30: #{tpu_custom_call.1} parent=27 // pred_check_branch
          %147 = sbr.rel (%p145) target = $region32
        $region31: #{tpu_custom_call.1} parent=27 // pred_region
          %148 = dma.done [#allocation5], 16
        $region32: #{tpu_custom_call.1} parent=27 // pred_fallthru
          _
        %s149 = sand.u32 %s49, 1
        %s150 = scalar_lea.sflag [#allocation3], %s149
        %s151 = sand.u32 %s49, 1
        %s152 = smul.addr %s151, 64
        %s153 = scalar_lea.vmem [#allocation6], %s152
        // Predicated region
        $region33: #{tpu_custom_call.1} parent=27 // pred_check
          %p154 = pneg %p62
        $region34: #{tpu_custom_call.1} parent=27 // pred_check_branch
          %156 = sbr.rel (%p154) target = $region36
        $region35: #{tpu_custom_call.1} parent=27 // pred_region
          %157 = dma.done %s150, 1024
        $region36: #{tpu_custom_call.1} parent=27 // pred_fallthru
          _
        %158 = sfence
        %p159 = pneg %p36
        %p160 = pneg %p33
        %s161 = sand.u32 %s49, 1
        %s162 = scalar_lea.sflag [#allocation3], %s161
        %s163 = sand.u32 %s49, 1
        %s164 = smul.addr %s163, 64
        %s165 = scalar_lea.vmem [#allocation6], %s164
        %p166 = pneg %p62
        %p167 = pneg %p59
        %p168 = pneg %p88
        %p169 = pneg %p85
        %s170 = sand.u32 %s75, 1
        %s171 = scalar_lea.sflag [#allocation4], %s170
        %s172 = sand.u32 %s75, 1
        %s173 = smul.addr %s172, 64
        %s174 = scalar_lea.vmem [#allocation7], %s173
        %s175 = smul.u32 2, %s20
        %s176 = smul.u32 2, %s20
        %v177 = vld [vmem:[%s153] sm:$0xff]
        %v178 = vld [vmem:[%s153 + $0x8] sm:$0xff]
        %v179 = vld [vmem:[%s153 + $0x10] sm:$0xff]
        %v180 = vld [vmem:[%s153 + $0x18] sm:$0xff]
        %v181 = vld [vmem:[%s153 + $0x20] sm:$0xff]
        %v182 = vld [vmem:[%s153 + $0x28] sm:$0xff]
        %v183 = vld [vmem:[%s153 + $0x30] sm:$0xff]
        %v184 = vld [vmem:[%s153 + $0x38] sm:$0xff]
        %v185 = vadd.f32 %v177, %v178
        %186 = vadd.xlane.f32.xlu0 %v185
        %v187 = vpop.xlane.xlu0 %186
        %v188 = vadd.f32 %v179, %v180
        %189 = vadd.xlane.f32.xlu0 %v188
        %v190 = vpop.xlane.xlu0 %189
        %v191 = vadd.f32 %v181, %v182
        %192 = vadd.xlane.f32.xlu0 %v191
        %v193 = vpop.xlane.xlu0 %192
        %v194 = vadd.f32 %v183, %v184
        %195 = vadd.xlane.f32.xlu0 %v194
        %v196 = vpop.xlane.xlu0 %195
        %v197 = vmul.f32 %v187, 0.00390625
        %v198 = vmul.f32 %v190, 0.00390625
        %v199 = vmul.f32 %v193, 0.00390625
        %v200 = vmul.f32 %v196, 0.00390625
        %v201 = vld [vmem:[%s153] sm:$0xff]
        %v202 = vld [vmem:[%s153 + $0x10] sm:$0xff]
        %v203 = vld [vmem:[%s153 + $0x20] sm:$0xff]
        %v204 = vld [vmem:[%s153 + $0x30] sm:$0xff]
        %s205 = sld [smem:[#allocation2]]
        %s206 = sld [smem:[#allocation2 + $0x1]]
        %s207 = sld [smem:[#allocation2 + $0x2]]
        %s208 = sld [smem:[#allocation2 + $0x3]]
        %s209 = sld [smem:[#allocation2 + $0x4]]
        %s210 = sld [smem:[#allocation2 + $0x5]]
        %s211 = sld [smem:[#allocation2 + $0x6]]
        %s212 = sld [smem:[#allocation2 + $0x7]]
        %s213 = sld [smem:[#allocation2 + $0x8]]
        %s214 = sld [smem:[#allocation2 + $0x9]]
        %vm219 = vcmask 1041408
        %v220 = vrot.slane %v197, 6
        %v221 = vrot.slane %v198, 6
        %v222 = vsel %vm219, %v220, %v221
        %v223 = vrot.slane %v199, 6
        %v224 = vrot.slane %v200, 6
        %v225 = vsel %vm219, %v223, %v224
        %v232 = vsel %vm219, 0.0, %v220
        %v233 = vsel %vm219, 0.0, %v223
        %v234 = vsel %vm219, %v221, 0.0
        %v235 = vsel %vm219, %v224, 0.0
        %v240 = vrot.slane %v201, 6
        %v241 = vrot.slane %v202, 6
        %v242 = vsel %vm219, %v240, %v241
        %v243 = vrot.slane %v203, 6
        %v244 = vrot.slane %v204, 6
        %v245 = vsel %vm219, %v243, %v244
        %246 = vrot.lane.b32.xlu0 %v240, 1
        %v247 = vpop.permute.xlu0 %246
        %248 = vrot.lane.b32.xlu0 %v242, 1
        %v249 = vpop.permute.xlu0 %248
        %250 = vrot.lane.b32.xlu0 %v241, 1
        %v251 = vpop.permute.xlu0 %250
        %252 = vrot.lane.b32.xlu0 %v243, 1
        %v253 = vpop.permute.xlu0 %252
        %254 = vrot.lane.b32.xlu0 %v245, 1
        %v255 = vpop.permute.xlu0 %254
        %256 = vrot.lane.b32.xlu0 %v244, 1
        %v257 = vpop.permute.xlu0 %256
        %v264 = vsel %vm219, 0.0, %v247
        %v265 = vsel %vm219, 0.0, %v253
        %v266 = vsel %vm219, %v251, 0.0
        %v267 = vsel %vm219, %v257, 0.0
        %v268 = vstv %s205
        %v269 = vmul.f32 %v268, %v232
        %v270 = vmul.f32 %v268, %v222
        %v271 = vmul.f32 %v268, %v233
        %v272 = vmul.f32 %v268, %v225
        %v273 = vadd.f32 %v269, 0.0
        %v274 = vadd.f32 %v270, 0.0
        %v275 = vadd.f32 %v271, 0.0
        %v276 = vadd.f32 %v272, 0.0
        %v277 = vstv %s206
        %v278 = vmul.f32 %v277, %v264
        %v279 = vmul.f32 %v277, %v249
        %v280 = vmul.f32 %v277, %v265
        %v281 = vmul.f32 %v277, %v255
        %v282 = vadd.f32 %v273, %v278
        %v283 = vadd.f32 %v274, %v279
        %v284 = vadd.f32 %v275, %v280
        %v285 = vadd.f32 %v276, %v281
        %v286 = vstv %s207
        %v287 = vmul.f32 %v286, %v232
        %v288 = vmul.f32 %v286, %v222
        %v289 = vmul.f32 %v286, %v234
        %v290 = vmul.f32 %v286, %v233
        %v291 = vmul.f32 %v286, %v225
        %v292 = vmul.f32 %v286, %v235
        %vm299 = vcmask 1046528
        %v300 = vrot.slane %v287, 1
        %v301 = vrot.slane %v288, 1
        %v302 = vsel %vm299, %v300, %v301
        %v303 = vrot.slane %v289, 1
        %v304 = vsel %vm299, %v301, %v303
        %v305 = vrot.slane %v290, 1
        %v306 = vrot.slane %v291, 1
        %v307 = vsel %vm299, %v305, %v306
        %v308 = vrot.slane %v292, 1
        %v309 = vsel %vm299, %v306, %v308
        %v314 = vadd.f32 %v282, %v302
        %v315 = vadd.f32 %v283, %v304
        %v316 = vadd.f32 %v284, %v307
        %v317 = vadd.f32 %v285, %v309
        %v318 = vstv %s208
        %v319 = vmul.f32 %v318, %v264
        %v320 = vmul.f32 %v318, %v249
        %v321 = vmul.f32 %v318, %v266
        %v322 = vmul.f32 %v318, %v265
        %v323 = vmul.f32 %v318, %v255
        %v324 = vmul.f32 %v318, %v267
        %v331 = vrot.slane %v319, 1
        %v332 = vrot.slane %v320, 1
        %v333 = vsel %vm299, %v331, %v332
        %v334 = vrot.slane %v321, 1
        %v335 = vsel %vm299, %v332, %v334
        %v336 = vrot.slane %v322, 1
        %v337 = vrot.slane %v323, 1
        %v338 = vsel %vm299, %v336, %v337
        %v339 = vrot.slane %v324, 1
        %v340 = vsel %vm299, %v337, %v339
        %v345 = vadd.f32 %v314, %v333
        %v346 = vadd.f32 %v315, %v335
        %v347 = vadd.f32 %v316, %v338
        %v348 = vadd.f32 %v317, %v340
        %v349 = vstv %s209
        %v350 = vmul.f32 %v349, %v232
        %v351 = vmul.f32 %v349, %v222
        %v352 = vmul.f32 %v349, %v234
        %v353 = vmul.f32 %v349, %v233
        %v354 = vmul.f32 %v349, %v225
        %v355 = vmul.f32 %v349, %v235
        %vm362 = vcmask 1045504
        %v363 = vrot.slane %v350, 2
        %v364 = vrot.slane %v351, 2
        %v365 = vsel %vm362, %v363, %v364
        %v366 = vrot.slane %v352, 2
        %v367 = vsel %vm362, %v364, %v366
        %v368 = vrot.slane %v353, 2
        %v369 = vrot.slane %v354, 2
        %v370 = vsel %vm362, %v368, %v369
        %v371 = vrot.slane %v355, 2
        %v372 = vsel %vm362, %v369, %v371
        %v377 = vadd.f32 %v345, %v365
        %v378 = vadd.f32 %v346, %v367
        %v379 = vadd.f32 %v347, %v370
        %v380 = vadd.f32 %v348, %v372
        %v381 = vstv %s210
        %v382 = vmul.f32 %v381, %v264
        %v383 = vmul.f32 %v381, %v249
        %v384 = vmul.f32 %v381, %v266
        %v385 = vmul.f32 %v381, %v265
        %v386 = vmul.f32 %v381, %v255
        %v387 = vmul.f32 %v381, %v267
        %v394 = vrot.slane %v382, 2
        %v395 = vrot.slane %v383, 2
        %v396 = vsel %vm362, %v394, %v395
        %v397 = vrot.slane %v384, 2
        %v398 = vsel %vm362, %v395, %v397
        %v399 = vrot.slane %v385, 2
        %v400 = vrot.slane %v386, 2
        %v401 = vsel %vm362, %v399, %v400
        %v402 = vrot.slane %v387, 2
        %v403 = vsel %vm362, %v400, %v402
        %v408 = vadd.f32 %v377, %v396
        %v409 = vadd.f32 %v378, %v398
        %v410 = vadd.f32 %v379, %v401
        %v411 = vadd.f32 %v380, %v403
        %v412 = vstv %s211
        %v413 = vmul.f32 %v412, %v232
        %v414 = vmul.f32 %v412, %v222
        %v415 = vmul.f32 %v412, %v234
        %v416 = vmul.f32 %v412, %v233
        %v417 = vmul.f32 %v412, %v225
        %v418 = vmul.f32 %v412, %v235
        %vm425 = vcmask 1044480
        %v426 = vrot.slane %v413, 3
        %v427 = vrot.slane %v414, 3
        %v428 = vsel %vm425, %v426, %v427
        %v429 = vrot.slane %v415, 3
        %v430 = vsel %vm425, %v427, %v429
        %v431 = vrot.slane %v416, 3
        %v432 = vrot.slane %v417, 3
        %v433 = vsel %vm425, %v431, %v432
        %v434 = vrot.slane %v418, 3
        %v435 = vsel %vm425, %v432, %v434
        %v440 = vadd.f32 %v408, %v428
        %v441 = vadd.f32 %v409, %v430
        %v442 = vadd.f32 %v410, %v433
        %v443 = vadd.f32 %v411, %v435
        %v444 = vstv %s212
        %v445 = vmul.f32 %v444, %v264
        %v446 = vmul.f32 %v444, %v249
        %v447 = vmul.f32 %v444, %v266
        %v448 = vmul.f32 %v444, %v265
        %v449 = vmul.f32 %v444, %v255
        %v450 = vmul.f32 %v444, %v267
        %v457 = vrot.slane %v445, 3
        %v458 = vrot.slane %v446, 3
        %v459 = vsel %vm425, %v457, %v458
        %v460 = vrot.slane %v447, 3
        %v461 = vsel %vm425, %v458, %v460
        %v462 = vrot.slane %v448, 3
        %v463 = vrot.slane %v449, 3
        %v464 = vsel %vm425, %v462, %v463
        %v465 = vrot.slane %v450, 3
        %v466 = vsel %vm425, %v463, %v465
        %v471 = vadd.f32 %v440, %v459
        %v472 = vadd.f32 %v441, %v461
        %v473 = vadd.f32 %v442, %v464
        %v474 = vadd.f32 %v443, %v466
        %v475 = vstv %s213
        %v476 = vmul.f32 %v475, %v232
        %v477 = vmul.f32 %v475, %v222
        %v478 = vmul.f32 %v475, %v234
        %v479 = vmul.f32 %v475, %v233
        %v480 = vmul.f32 %v475, %v225
        %v481 = vmul.f32 %v475, %v235
        %vm488 = vcmask 1043456
        %v489 = vrot.slane %v476, 4
        %v490 = vrot.slane %v477, 4
        %v491 = vsel %vm488, %v489, %v490
        %v492 = vrot.slane %v478, 4
        %v493 = vsel %vm488, %v490, %v492
        %v494 = vrot.slane %v479, 4
        %v495 = vrot.slane %v480, 4
        %v496 = vsel %vm488, %v494, %v495
        %v497 = vrot.slane %v481, 4
        %v498 = vsel %vm488, %v495, %v497
        %v503 = vadd.f32 %v471, %v491
        %v504 = vadd.f32 %v472, %v493
        %v505 = vadd.f32 %v473, %v496
        %v506 = vadd.f32 %v474, %v498
        %v507 = vstv %s214
        %v508 = vmul.f32 %v507, %v264
        %v509 = vmul.f32 %v507, %v249
        %v510 = vmul.f32 %v507, %v266
        %v511 = vmul.f32 %v507, %v265
        %v512 = vmul.f32 %v507, %v255
        %v513 = vmul.f32 %v507, %v267
        %v520 = vrot.slane %v508, 4
        %v521 = vrot.slane %v509, 4
        %v522 = vsel %vm488, %v520, %v521
        %v523 = vrot.slane %v510, 4
        %v524 = vsel %vm488, %v521, %v523
        %v525 = vrot.slane %v511, 4
        %v526 = vrot.slane %v512, 4
        %v527 = vsel %vm488, %v525, %v526
        %v528 = vrot.slane %v513, 4
        %v529 = vsel %vm488, %v526, %v528
        %v534 = vadd.f32 %v503, %v522
        %v535 = vadd.f32 %v504, %v524
        %v536 = vadd.f32 %v505, %v527
        %v537 = vadd.f32 %v506, %v529
        %v538 = vxor.u32 %v534, 2147483648
        %v539 = vxor.u32 %v535, 2147483648
        %v540 = vxor.u32 %v536, 2147483648
        %v541 = vxor.u32 %v537, 2147483648
        %v542 = vmul.f32 %v538, 1.442695
        %v543 = vpow.pop %v542
        %v544 = vmul.f32 %v539, 1.442695
        %v545 = vpow.pop %v544
        %v546 = vmul.f32 %v540, 1.442695
        %v547 = vpow.pop %v546
        %v548 = vmul.f32 %v541, 1.442695
        %v549 = vpow.pop %v548
        %v550 = vadd.f32 %v543, 1.0
        %v551 = vadd.f32 %v545, 1.0
        %v552 = vadd.f32 %v547, 1.0
        %v553 = vadd.f32 %v549, 1.0
        %v554 = vrcp.pop %v550
        %v555 = vmul.f32 1.0, %v554
        %v556 = vrcp.pop %v551
        %v557 = vmul.f32 1.0, %v556
        %v558 = vrcp.pop %v552
        %v559 = vmul.f32 1.0, %v558
        %v560 = vrcp.pop %v553
        %v561 = vmul.f32 1.0, %v560
        %v562 = vadd.f32 %v555, 1.0
        %v563 = vadd.f32 %v557, 1.0
        %v564 = vadd.f32 %v559, 1.0
        %v565 = vadd.f32 %v561, 1.0
        %567 = vset.pattern.permute.xlu0 0
        %568 = vperm.xlu0 %567, %v562
        %v569 = vpop.permute.xlu0 %568
        %572 = vset.pattern.permute.xlu0 0
        %573 = vperm.xlu0 %572, %v563
        %v574 = vpop.permute.xlu0 %573
        %577 = vset.pattern.permute.xlu0 0
        %578 = vperm.xlu0 %577, %v564
        %v579 = vpop.permute.xlu0 %578
        %582 = vset.pattern.permute.xlu0 0
        %583 = vperm.xlu0 %582, %v565
        %v584 = vpop.permute.xlu0 %583
        %v586 = vmul.f32 %v177, %v569
        %v587 = vmul.f32 %v178, %v569
        %v588 = vmul.f32 %v179, %v574
        %v589 = vmul.f32 %v180, %v574
        %v590 = vmul.f32 %v181, %v579
        %v591 = vmul.f32 %v182, %v579
        %v592 = vmul.f32 %v183, %v584
        %v593 = vmul.f32 %v184, %v584
        %594 = vst [vmem:[%s174] sm:$0xff] %v586
        %595 = vst [vmem:[%s174 + $0x8] sm:$0xff] %v587
        %596 = vst [vmem:[%s174 + $0x10] sm:$0xff] %v588
        %597 = vst [vmem:[%s174 + $0x18] sm:$0xff] %v589
        %598 = vst [vmem:[%s174 + $0x20] sm:$0xff] %v590
        %599 = vst [vmem:[%s174 + $0x28] sm:$0xff] %v591
        %600 = vst [vmem:[%s174 + $0x30] sm:$0xff] %v592
        %601 = vst [vmem:[%s174 + $0x38] sm:$0xff] %v593
        %s602 = sand.u32 %s75, 1
        %s603 = scalar_lea.sflag [#allocation4], %s602
        %s604 = sand.u32 %s75, 1
        %s605 = smul.addr %s604, 64
        %s606 = scalar_lea.vmem [#allocation7], %s605
        // Predicated region
        $region37: #{tpu_custom_call.1} parent=27 // pred_check
          %p607 = pneg %p85
        $region38: #{tpu_custom_call.1} parent=27 // pred_check_branch
          %609 = sbr.rel (%p607) target = $region40
        $region39: #{tpu_custom_call.1} parent=27 // pred_region
          %s610 = smul.u32 2, %s20
          %s612 = ssub.s32 1024, 1024
          %613 = vsyncadd %s603, %s612
          %s614 = smul.addr %s610, 4
          %s615 = smul.addr %s614, 128
          %s616 = scalar_lea.hbm %s2, %s615
          %s617 = sshll.u32 %s606, 4
          %s618 = int_to_ptr.vmem [resolvable:$true] %s617
          %623 = dma.vmem_to_hbm [thread:$0]  %s618, 1024, %s616, %s603, 256, 256, 16
        $region40: #{tpu_custom_call.1} parent=27 // pred_fallthru
          _
      $region28: #{tpu_custom_call.1} parent=5 // pred_fallthru
        _
      %p624 = scmp.le.s32.totalorder 2, %s15
      // Predicated region
      $region41: #{tpu_custom_call.1} parent=5 // pred_check
        %p625 = pneg %p624
      $region42: #{tpu_custom_call.1} parent=5 // pred_check_branch
        %627 = sbr.rel (%p625) target = $region44
      $region43: #{tpu_custom_call.1} parent=5 // pred_region
        %s628 = ssub.s32 %s15, 2
        // Predicated region
        $region45: #{tpu_custom_call.1} parent=43 // pred_check
          %p629 = pneg %p91
        $region46: #{tpu_custom_call.1} parent=43 // pred_check_branch
          %631 = sbr.rel (%p629) target = $region48
        $region47: #{tpu_custom_call.1} parent=43 // pred_region
          %s632 = sand.u32 %s76, 1
          %s633 = scalar_lea.sflag [#allocation4], %s632
          %s634 = sand.u32 %s76, 1
          %s635 = smul.addr %s634, 64
          %s636 = scalar_lea.vmem [#allocation7], %s635
          %637 = dma.done %s633, 1024
        $region48: #{tpu_custom_call.1} parent=43 // pred_fallthru
          _
      $region44: #{tpu_custom_call.1} parent=5 // pred_fallthru
        _
    $region6: #{tpu_custom_call.1} parent=1 // loop_footer
      %s19 = sadd.s32 1, %s15
    $region7: #{tpu_custom_call.1} parent=1 // loop_footer_branch
      %14 = sbr.rel target = $region3
    $region8: #{tpu_custom_call.1} parent=1 // loop_exit
      _
    %638 = vsyncpa [#allocation3], 1
    %s639 = scalar_lea.sflag [#allocation3], 1
    %640 = vsyncpa %s639, 1
    %641 = vsyncpa [#allocation4], 1
    %s642 = scalar_lea.sflag [#allocation4], 1
    %643 = vsyncpa %s642, 1
    %644 = vsyncpa [#allocation5], 1
    %s645 = scalar_lea.sflag [#allocation5], 1
    %646 = vsyncpa %s645, 1

</llo_original>
